<compile_context>
chip_gen: v7x
topology: tpu7x:2x2x1
jax: 0.10.0
libtpu: 0.0.40
codegen_flags: <defaults>
</compile_context>

<pallas_src>
import functools

import jax
import jax.numpy as jnp
from jax import lax
from jax.experimental import pallas as pl
from jax.experimental.pallas import tpu as pltpu


_ACC_BUDGET = 32 * 1024     # f32 accumulator bytes kept register-resident (VPU path)
_STEP_TARGET = 2 << 20      # target HBM bytes moved per grid step
_VMEM_BUDGET = 12 << 20     # double-buffered block budget (safe under every default)


def _round_up(v, m):
    return -(-v // m) * m


def _conv1x1_bn_relu_kernel(x_ref, w_ref, shift_ref, o_ref, *, use_mxu, inner_batch):
    # x_ref:     (bn, Cin, TM)  images x spatial positions (lane-dense on TM)
    # w_ref:     (Cout, Cin)    conv weight with BN scale folded in
    # shift_ref: (Cout, 1)      BN shift (f32)
    # o_ref:     (bn, Cout, TM)
    w = w_ref[...]
    shift = shift_ref[...]
    bn, cin, _ = x_ref.shape

    if use_mxu:
        def process(b):
            xs = x_ref[pl.ds(b, 1), :, :][0]                       # (Cin, TM)
            # f32 accumulation on the MXU; BN shift + ReLU fused into one epilogue.
            y = jnp.dot(w, xs, preferred_element_type=jnp.float32) + shift
            o_ref[pl.ds(b, 1), :, :] = jnp.maximum(y, 0.0).astype(o_ref.dtype)[None]
        n_inner = bn
    else:
        ib = inner_batch
        wf = w.astype(jnp.float32)

        def process(i):
            b0 = i * ib
            xs = x_ref[pl.ds(b0, ib), :, :].astype(jnp.float32)    # (ib, Cin, TM)
            # BN shift folded into the accumulator init; Cin broadcast-FMAs on the VPU.
            y = shift[None] + wf[None, :, 0:1] * xs[:, 0:1, :]
            for ci in range(1, cin):
                y = y + wf[None, :, ci:ci + 1] * xs[:, ci:ci + 1, :]
            o_ref[pl.ds(b0, ib), :, :] = jnp.maximum(y, 0.0).astype(o_ref.dtype)
        n_inner = bn // ib

    if n_inner == 1:
        process(0)
    else:
        def body(i, carry):
            process(i)
            return carry
        lax.fori_loop(0, n_inner, body, 0)


def _pick_blocks(N, Cin, Cout, M, x_bytes, o_bytes):
    """Choose (batch block, spatial tile, mxu flag, inner batch)."""
    per_lane = Cin * x_bytes + Cout * o_bytes
    m_pad = _round_up(M, 128)
    per_image = m_pad * per_lane

    if N > 1 and per_image < _STEP_TARGET:
        # Small feature maps: batch several images per grid step (full spatial extent).
        bn = int(min(N, max(1, _STEP_TARGET // per_image),
                     max(1, _VMEM_BUDGET // (2 * per_image))))
        tm = M
    else:
        # One image (or a 128-aligned spatial slice of it) per grid step.
        bn = 1
        tm = int(min(max(128, (_STEP_TARGET // per_lane) // 128 * 128),
                     max(128, (_VMEM_BUDGET // (2 * per_lane)) // 128 * 128),
                     m_pad))
        if tm >= M:
            tm = M          # full extent: no masked spatial tail

    # Expose >=2 grid steps when there is enough work (lets v7x's 2 cores split).
    if pl.cdiv(N, bn) * pl.cdiv(M, tm) == 1 and bn * tm * per_lane >= (512 << 10):
        if bn % 2 == 0:
            bn //= 2
        elif bn == 1 and tm % 256 == 0:
            tm //= 2

    # VPU broadcast-FMA only when the contraction is tiny AND its f32 accumulator
    # stays register-resident; otherwise the (otherwise idle) MXU does it.
    use_mxu = (Cin >= 8) or (Cout * tm * 4 > _ACC_BUDGET)
    if use_mxu:
        ib = 1
    else:
        ib = int(min(bn, 8, max(1, _ACC_BUDGET // (Cout * tm * 4))))
        bn = max(ib, (bn // ib) * ib)   # keep bn a multiple of the inner batch
    return bn, tm, use_mxu, ib


def _conv1x1_bn_relu(x, w, shift, bn, tm, use_mxu, inner_batch):
    """x: [N, Cin, M], w: [Cout, Cin], shift: [Cout, 1] -> [N, Cout, M] (x.dtype)."""
    N, Cin, M = x.shape
    Cout = w.shape[0]
    grid = (pl.cdiv(N, bn), pl.cdiv(M, tm))
    kernel = functools.partial(_conv1x1_bn_relu_kernel,
                               use_mxu=use_mxu, inner_batch=inner_batch)
    return pl.pallas_call(
        kernel,
        out_shape=jax.ShapeDtypeStruct((N, Cout, M), x.dtype),
        grid_spec=pltpu.PrefetchScalarGridSpec(
            num_scalar_prefetch=0,
            grid=grid,
            in_specs=[
                pl.BlockSpec((bn, Cin, tm), lambda n, m: (n, 0, m)),
                pl.BlockSpec((Cout, Cin), lambda n, m: (0, 0)),
                pl.BlockSpec((Cout, 1), lambda n, m: (0, 0)),
            ],
            out_specs=pl.BlockSpec((bn, Cout, tm), lambda n, m: (n, 0, m)),
        ),
        compiler_params=pltpu.CompilerParams(
            dimension_semantics=("parallel", "parallel")),
    )(x, w, shift)


def one_by_one_block(x_nchw, weight, gamma, beta, running_mean, running_var,
                     *, stride=1, padding=1, eps=1e-5):
    """Forward of OneByOneBlock: Conv2d(1x1, stride, padding, bias=False)
    -> BatchNorm2d (eval mode) -> ReLU.  NCHW in / NCHW out, dtype preserved."""
    N, Cin, H, W = x_nchw.shape
    Cout = weight.shape[0]

    x = x_nchw
    if x.dtype not in (jnp.float32, jnp.bfloat16):
        x = x.astype(jnp.float32)     # rare fallback; f32/bf16 stay untouched

    # kernel_size=1: zero-pad spatially, take strided positions; the conv itself is a
    # pure per-pixel channel matmul.  Input stays NCHW (no transposes).
    # TODO(synk): when padding>0 or stride>1 this is one extra fused XLA copy of the
    # activations; fusing pad/stride into the kernel's index_map (per-row lane shifts
    # for the border) is not implemented.
    if padding > 0:
        x = jnp.pad(x, ((0, 0), (0, 0), (padding, padding), (padding, padding)))
    if stride > 1:
        x = x[:, :, ::stride, ::stride]
    Ho, Wo = x.shape[2], x.shape[3]
    x = x.reshape(N, Cin, Ho * Wo)    # metadata-only reshape

    # Fold eval-mode BatchNorm: y = scale*(W@x) + shift, scale folded into W.
    # TODO(synk): training-mode BN (batch statistics) not implemented; eval-mode fold.
    scale = gamma.astype(jnp.float32) / jnp.sqrt(running_var.astype(jnp.float32) + eps)
    w_mat = weight.reshape(Cout, Cin).astype(jnp.float32) * scale[:, None]
    shift = (beta.astype(jnp.float32)
             - running_mean.astype(jnp.float32) * scale).reshape(Cout, 1)

    bn, tm, use_mxu, ib = _pick_blocks(N, Cin, Cout, Ho * Wo,
                                       x.dtype.itemsize, x.dtype.itemsize)
    # Feed the MXU in the input dtype (bf16 at native rate, f32 accumulation); the VPU
    # path keeps f32 weights and upcasts the block in-kernel.
    if use_mxu and x.dtype == jnp.bfloat16:
        w_mat = w_mat.astype(jnp.bfloat16)

    out = _conv1x1_bn_relu(x, w_mat, shift, bn, tm, use_mxu, ib)  # (N, Cout, Ho*Wo)
    return out.reshape(N, Cout, Ho, Wo)


# ----------------------------------------------------------------------------------
# Self-test
# ----------------------------------------------------------------------------------
def _reference(x, weight, gamma, beta, mean, var, stride, padding, eps=1e-5):
    Cout, Cin = weight.shape[0], weight.shape[1]
    xf = x.astype(jnp.float32)
    if padding > 0:
        xf = jnp.pad(xf, ((0, 0), (0, 0), (padding, padding), (padding, padding)))
    if stride > 1:
        xf = xf[:, :, ::stride, ::stride]
    y = jnp.einsum("nchw,oc->nohw", xf, weight.reshape(Cout, Cin).astype(jnp.float32),
                   precision=jax.lax.Precision.HIGHEST)
    s = gamma / jnp.sqrt(var + eps)
    y = y * s[None, :, None, None] + (beta - mean * s)[None, :, None, None]
    return jnp.maximum(y, 0.0)


def _run_case(name, key, *, N, Cin, Cout, H, W, stride, padding, dtype, atol, rtol):
    ks = jax.random.split(key, 6)
    x = jax.random.normal(ks[0], (N, Cin, H, W), dtype=jnp.float32).astype(dtype)
    weight = 0.1 * jax.random.normal(ks[1], (Cout, Cin, 1, 1), dtype=jnp.float32)
    gamma = 1.0 + 0.1 * jax.random.normal(ks[2], (Cout,), dtype=jnp.float32)
    beta = 0.1 * jax.random.normal(ks[3], (Cout,), dtype=jnp.float32)
    mean = 0.1 * jax.random.normal(ks[4], (Cout,), dtype=jnp.float32)
    var = jnp.abs(1.0 + 0.1 * jax.random.normal(ks[5], (Cout,), dtype=jnp.float32))

    fwd = jax.jit(functools.partial(one_by_one_block, stride=stride, padding=padding))
    out = jax.block_until_ready(fwd(x, weight, gamma, beta, mean, var))

    ref = _reference(x, weight, gamma, beta, mean, var, stride, padding)
    Ho = (H + 2 * padding - 1) // stride + 1
    Wo = (W + 2 * padding - 1) // stride + 1
    assert out.shape == (N, Cout, Ho, Wo), (name, out.shape)
    assert out.dtype == x.dtype, (name, out.dtype)
    ok = jnp.allclose(out.astype(jnp.float32), ref, atol=atol, rtol=rtol)
    err = float(jnp.max(jnp.abs(out.astype(jnp.float32) - ref)))
    assert bool(ok), (name, err)


if __name__ == "__main__":
    key = jax.random.PRNGKey(0)
    keys = jax.random.split(key, 4)

    # Primary case (module defaults: stride=1, padding=1) -> VPU path, batched block.
    _run_case("vpu_f32", keys[0], N=2, Cin=4, Cout=8, H=16, W=16,
              stride=1, padding=1, dtype=jnp.float32, atol=1e-4, rtol=1e-4)
    # MXU path, stride=2, padding=0.
    _run_case("mxu_f32_stride2", keys[1], N=1, Cin=16, Cout=32, H=16, W=16,
              stride=2, padding=0, dtype=jnp.float32, atol=2e-2, rtol=2e-2)
    # VPU path with the in-kernel per-image loop (several images per grid step).
    _run_case("vpu_f32_batchloop", keys[2], N=3, Cin=4, Cout=8, H=28, W=28,
              stride=1, padding=1, dtype=jnp.float32, atol=1e-4, rtol=1e-4)
    # bf16 I/O on the MXU (bf16 operands, f32 accumulation, bf16 output).
    _run_case("mxu_bf16", keys[3], N=2, Cin=8, Cout=16, H=12, W=12,
              stride=1, padding=1, dtype=jnp.bfloat16, atol=2e-2, rtol=2e-2)

    print("KERNEL_OK")
</pallas_src>

<mosaic_0001>
module attributes {stable_mosaic.version = 11 : i64} {
  func.func @_conv1x1_bn_relu_kernel(%arg0: i32, %arg1: i32, %arg2: memref<2x4x324xf32, #tpu.memory_space<vmem>>, %arg3: memref<8x4xf32, #tpu.memory_space<vmem>>, %arg4: memref<8x1xf32, #tpu.memory_space<vmem>>, %arg5: memref<2x8x324xf32, #tpu.memory_space<vmem>>) attributes {dimension_semantics = [#tpu.dimension_semantics<parallel>, #tpu.dimension_semantics<parallel>], iteration_bounds = array<i64: 1, 1>, scalar_prefetch = 0 : i64, scratch_operands = 0 : i64, tpu.core_type = #tpu.core_type<tc>, window_params = [{transform_indices = @transform_0, window_bounds = array<i64: 2, 4, 324>}, {pipeline_mode = #tpu.pipeline_mode<synchronous>, transform_indices = @transform_1, window_bounds = array<i64: 8, 4>}, {pipeline_mode = #tpu.pipeline_mode<synchronous>, transform_indices = @transform_2, window_bounds = array<i64: 8, 1>}, {transform_indices = @transform_3, window_bounds = array<i64: 2, 8, 324>}]} {
    %c0 = arith.constant 0 : index
    %c0_0 = arith.constant 0 : index
    %0 = vector.load %arg3[%c0, %c0_0] : memref<8x4xf32, #tpu.memory_space<vmem>>, vector<8x4xf32>
    %c0_1 = arith.constant 0 : index
    %c0_2 = arith.constant 0 : index
    %1 = vector.load %arg4[%c0_1, %c0_2] : memref<8x1xf32, #tpu.memory_space<vmem>>, vector<8x1xf32>
    %c0_3 = arith.constant 0 : index
    %c0_4 = arith.constant 0 : index
    %c0_5 = arith.constant 0 : index
    %2 = vector.load %arg2[%c0_3, %c0_4, %c0_5] : memref<2x4x324xf32, #tpu.memory_space<vmem>>, vector<2x4x324xf32>
    %3 = vector.shape_cast %1 : vector<8x1xf32> to vector<1x8x1xf32>
    %4 = vector.extract_strided_slice %0 {offsets = [0, 0], sizes = [8, 1], strides = [1, 1]} : vector<8x4xf32> to vector<8x1xf32>
    %5 = vector.shape_cast %4 : vector<8x1xf32> to vector<1x8x1xf32>
    %6 = vector.extract_strided_slice %2 {offsets = [0, 0, 0], sizes = [2, 1, 324], strides = [1, 1, 1]} : vector<2x4x324xf32> to vector<2x1x324xf32>
    %7 = vector.broadcast %5 : vector<1x8x1xf32> to vector<2x8x324xf32>
    %8 = vector.broadcast %6 : vector<2x1x324xf32> to vector<2x8x324xf32>
    %9 = arith.mulf %7, %8 : vector<2x8x324xf32>
    %10 = vector.broadcast %3 : vector<1x8x1xf32> to vector<2x8x324xf32>
    %11 = arith.addf %10, %9 : vector<2x8x324xf32>
    %12 = vector.extract_strided_slice %0 {offsets = [0, 1], sizes = [8, 1], strides = [1, 1]} : vector<8x4xf32> to vector<8x1xf32>
    %13 = vector.shape_cast %12 : vector<8x1xf32> to vector<1x8x1xf32>
    %14 = vector.extract_strided_slice %2 {offsets = [0, 1, 0], sizes = [2, 1, 324], strides = [1, 1, 1]} : vector<2x4x324xf32> to vector<2x1x324xf32>
    %15 = vector.broadcast %13 : vector<1x8x1xf32> to vector<2x8x324xf32>
    %16 = vector.broadcast %14 : vector<2x1x324xf32> to vector<2x8x324xf32>
    %17 = arith.mulf %15, %16 : vector<2x8x324xf32>
    %18 = arith.addf %11, %17 : vector<2x8x324xf32>
    %19 = vector.extract_strided_slice %0 {offsets = [0, 2], sizes = [8, 1], strides = [1, 1]} : vector<8x4xf32> to vector<8x1xf32>
    %20 = vector.shape_cast %19 : vector<8x1xf32> to vector<1x8x1xf32>
    %21 = vector.extract_strided_slice %2 {offsets = [0, 2, 0], sizes = [2, 1, 324], strides = [1, 1, 1]} : vector<2x4x324xf32> to vector<2x1x324xf32>
    %22 = vector.broadcast %20 : vector<1x8x1xf32> to vector<2x8x324xf32>
    %23 = vector.broadcast %21 : vector<2x1x324xf32> to vector<2x8x324xf32>
    %24 = arith.mulf %22, %23 : vector<2x8x324xf32>
    %25 = arith.addf %18, %24 : vector<2x8x324xf32>
    %26 = vector.extract_strided_slice %0 {offsets = [0, 3], sizes = [8, 1], strides = [1, 1]} : vector<8x4xf32> to vector<8x1xf32>
    %27 = vector.shape_cast %26 : vector<8x1xf32> to vector<1x8x1xf32>
    %28 = vector.extract_strided_slice %2 {offsets = [0, 3, 0], sizes = [2, 1, 324], strides = [1, 1, 1]} : vector<2x4x324xf32> to vector<2x1x324xf32>
    %29 = vector.broadcast %27 : vector<1x8x1xf32> to vector<2x8x324xf32>
    %30 = vector.broadcast %28 : vector<2x1x324xf32> to vector<2x8x324xf32>
    %31 = arith.mulf %29, %30 : vector<2x8x324xf32>
    %32 = arith.addf %25, %31 : vector<2x8x324xf32>
    %cst = arith.constant 0.000000e+00 : f32
    %33 = vector.broadcast %cst : f32 to vector<2x8x324xf32>
    %34 = arith.maximumf %32, %33 : vector<2x8x324xf32>
    %c0_6 = arith.constant 0 : index
    %c0_7 = arith.constant 0 : index
    %c0_8 = arith.constant 0 : index
    %35 = vector.load %arg5[%c0_6, %c0_7, %c0_8] : memref<2x8x324xf32, #tpu.memory_space<vmem>>, vector<2x8x324xf32>
    tpu.vector_store %arg5[%c0_6, %c0_7, %c0_8], %34 {strides = array<i32>} : memref<2x8x324xf32, #tpu.memory_space<vmem>>, vector<2x8x324xf32>,
    return
  }
  func.func @transform_0(%arg0: i32, %arg1: i32) -> (i32, i32, i32) {
    %c0_i32 = arith.constant 0 : i32
    %c0_i32_0 = arith.constant 0 : i32
    return %arg0, %c0_i32, %arg1 : i32, i32, i32
  }
  func.func @transform_1(%arg0: i32, %arg1: i32) -> (i32, i32) {
    %c0_i32 = arith.constant 0 : i32
    %c0_i32_0 = arith.constant 0 : i32
    %c0_i32_1 = arith.constant 0 : i32
    return %c0_i32, %c0_i32_0 : i32, i32
  }
  func.func @transform_2(%arg0: i32, %arg1: i32) -> (i32, i32) {
    %c0_i32 = arith.constant 0 : i32
    %c0_i32_0 = arith.constant 0 : i32
    %c0_i32_1 = arith.constant 0 : i32
    return %c0_i32, %c0_i32_0 : i32, i32
  }
  func.func @transform_3(%arg0: i32, %arg1: i32) -> (i32, i32, i32) {
    %c0_i32 = arith.constant 0 : i32
    %c0_i32_0 = arith.constant 0 : i32
    return %arg0, %c0_i32, %arg1 : i32, i32, i32
  }
}

</mosaic_0001>

<llo_original>
// kernel: one_by_one_block.1
$region0: #{one_by_one_block.1}
  #allocation0 [shape = 'u32[]', space=smem, size = 0x4, offset = 0x4, fixed_abs, tag = 'smem constant byte address 0x4 - core index']
  #allocation1 [shape = 'u32[144,128]{1,0:T(1,128)}', space=vmem, size = 0x12000, scoped, tag = 'internal scratch']
  %s0 = inlined_call_operand.vmem [shape: f32[2,4,324], index: 0, kind: input, shape index: {}]
  %s1 = inlined_call_operand.vmem [shape: f32[8,4], index: 1, kind: input, shape index: {}]
  %s2 = inlined_call_operand.vmem [shape: f32[8,1], index: 2, kind: input, shape index: {}]
  %s3 = inlined_call_operand.vmem [shape: f32[2,8,324], index: 3, kind: output, shape index: {}]
  %s4 = sld [smem:[#allocation0]]
  $region22: #{one_by_one_block.1} parent=0
    _
  %s6 = ssub.s32 1, %s4
  %s7 = scalar_select 0, %s6, %s4
  // Predicated region
  $region2: #{one_by_one_block.1} parent=0 // pred_check
    _
  $region3: #{one_by_one_block.1} parent=0 // pred_check_branch
    %9 = sbr.rel (0) target = $region5
  $region4: #{one_by_one_block.1} parent=0 // pred_region
    _
  $region5: #{one_by_one_block.1} parent=0 // pred_fallthru
    _
  // Predicated region
  $region6: #{one_by_one_block.1} parent=0 // pred_check
    _
  $region7: #{one_by_one_block.1} parent=0 // pred_check_branch
    %11 = sbr.rel (0) target = $region9
  $region8: #{one_by_one_block.1} parent=0 // pred_region
    _
  $region9: #{one_by_one_block.1} parent=0 // pred_fallthru
    _
  // Predicated region
  $region10: #{one_by_one_block.1} parent=0 // pred_check
    _
  $region11: #{one_by_one_block.1} parent=0 // pred_check_branch
    %13 = sbr.rel (0) target = $region13
  $region12: #{one_by_one_block.1} parent=0 // pred_region
    _
  $region13: #{one_by_one_block.1} parent=0 // pred_fallthru
    _
  %v14 = vld [vmem:[%s1] sm:$0xff]
  %v15 = vld [vmem:[%s2] sm:$0xff]
  %v16 = vld [vmem:[%s0] sm:$0xff]
  %v17 = vld [vmem:[%s0 + $0x8] sm:$0xf]
  %v18 = vld [vmem:[%s0 + $0xc] sm:$0xff]
  %v19 = vld [vmem:[%s0 + $0x14] sm:$0xf]
  %21 = vset.pattern.permute.xlu0 0
  %22 = vperm.xlu0 %21, %v14
  %v23 = vpop.permute.xlu0 %22
  %v29 = vlaneseq
  %v30 = vshrl.u32 %v29, 7
  %v31 = vsub.s32 0, %v30
  %v32 = vrot.slane %v16, %v31
  %v33 = vlaneseq
  %v34 = vshrl.u32 %v33, 7
  %v35 = vsub.s32 4, %v34
  %v36 = vrot.slane %v16, %v35
  %v37 = vlaneseq
  %v38 = vshrl.u32 %v37, 7
  %v39 = vsub.s32 0, %v38
  %v40 = vrot.slane %v17, %v39
  %v41 = vlaneseq
  %v42 = vshrl.u32 %v41, 7
  %v43 = vsub.s32 0, %v42
  %v44 = vrot.slane %v18, %v43
  %v45 = vlaneseq
  %v46 = vshrl.u32 %v45, 7
  %v47 = vsub.s32 4, %v46
  %v48 = vrot.slane %v18, %v47
  %v49 = vlaneseq
  %v50 = vshrl.u32 %v49, 7
  %v51 = vsub.s32 0, %v50
  %v52 = vrot.slane %v19, %v51
  %v59 = vlaneseq
  %v60 = vshrl.u32 %v59, 7
  %v61 = vsub.s32 0, %v60
  %v62 = vrot.slane %v32, %v61
  %v63 = vlaneseq
  %v64 = vshrl.u32 %v63, 7
  %v65 = vsub.s32 0, %v64
  %v66 = vrot.slane %v36, %v65
  %v67 = vlaneseq
  %v68 = vshrl.u32 %v67, 7
  %v69 = vsub.s32 0, %v68
  %v70 = vrot.slane %v40, %v69
  %v71 = vlaneseq
  %v72 = vshrl.u32 %v71, 7
  %v73 = vsub.s32 0, %v72
  %v74 = vrot.slane %v44, %v73
  %v75 = vlaneseq
  %v76 = vshrl.u32 %v75, 7
  %v77 = vsub.s32 0, %v76
  %v78 = vrot.slane %v48, %v77
  %v79 = vlaneseq
  %v80 = vshrl.u32 %v79, 7
  %v81 = vsub.s32 0, %v80
  %v82 = vrot.slane %v52, %v81
  %v83 = vmul.f32 %v23, %v62
  %v84 = vmul.f32 %v23, %v66
  %v85 = vmul.f32 %v23, %v70
  %v86 = vmul.f32 %v23, %v74
  %v87 = vmul.f32 %v23, %v78
  %v88 = vmul.f32 %v23, %v82
  %90 = vset.pattern.permute.xlu0 0
  %91 = vperm.xlu0 %90, %v15
  %v92 = vpop.permute.xlu0 %91
  %v94 = vadd.f32 %v92, %v83
  %v95 = vadd.f32 %v92, %v84
  %v96 = vadd.f32 %v92, %v85
  %v97 = vadd.f32 %v92, %v86
  %v98 = vadd.f32 %v92, %v87
  %v99 = vadd.f32 %v92, %v88
  %100 = vset.pattern.permute.xlu0 1
  %101 = vperm.xlu0 %100, %v14
  %v102 = vpop.permute.xlu0 %101
  %v104 = vlaneseq
  %v105 = vshrl.u32 %v104, 7
  %v106 = vsub.s32 1, %v105
  %v107 = vrot.slane %v16, %v106
  %v108 = vlaneseq
  %v109 = vshrl.u32 %v108, 7
  %v110 = vsub.s32 5, %v109
  %v111 = vrot.slane %v16, %v110
  %v112 = vlaneseq
  %v113 = vshrl.u32 %v112, 7
  %v114 = vsub.s32 1, %v113
  %v115 = vrot.slane %v17, %v114
  %v116 = vlaneseq
  %v117 = vshrl.u32 %v116, 7
  %v118 = vsub.s32 1, %v117
  %v119 = vrot.slane %v18, %v118
  %v120 = vlaneseq
  %v121 = vshrl.u32 %v120, 7
  %v122 = vsub.s32 5, %v121
  %v123 = vrot.slane %v18, %v122
  %v124 = vlaneseq
  %v125 = vshrl.u32 %v124, 7
  %v126 = vsub.s32 1, %v125
  %v127 = vrot.slane %v19, %v126
  %v134 = vlaneseq
  %v135 = vshrl.u32 %v134, 7
  %v136 = vsub.s32 1, %v135
  %v137 = vrot.slane %v107, %v136
  %v138 = vlaneseq
  %v139 = vshrl.u32 %v138, 7
  %v140 = vsub.s32 1, %v139
  %v141 = vrot.slane %v111, %v140
  %v142 = vlaneseq
  %v143 = vshrl.u32 %v142, 7
  %v144 = vsub.s32 1, %v143
  %v145 = vrot.slane %v115, %v144
  %v146 = vlaneseq
  %v147 = vshrl.u32 %v146, 7
  %v148 = vsub.s32 1, %v147
  %v149 = vrot.slane %v119, %v148
  %v150 = vlaneseq
  %v151 = vshrl.u32 %v150, 7
  %v152 = vsub.s32 1, %v151
  %v153 = vrot.slane %v123, %v152
  %v154 = vlaneseq
  %v155 = vshrl.u32 %v154, 7
  %v156 = vsub.s32 1, %v155
  %v157 = vrot.slane %v127, %v156
  %v158 = vmul.f32 %v102, %v137
  %v159 = vmul.f32 %v102, %v141
  %v160 = vmul.f32 %v102, %v145
  %v161 = vmul.f32 %v102, %v149
  %v162 = vmul.f32 %v102, %v153
  %v163 = vmul.f32 %v102, %v157
  %v164 = vadd.f32 %v94, %v158
  %v165 = vadd.f32 %v95, %v159
  %v166 = vadd.f32 %v96, %v160
  %v167 = vadd.f32 %v97, %v161
  %v168 = vadd.f32 %v98, %v162
  %v169 = vadd.f32 %v99, %v163
  %170 = vset.pattern.permute.xlu0 2
  %171 = vperm.xlu0 %170, %v14
  %v172 = vpop.permute.xlu0 %171
  %v174 = vlaneseq
  %v175 = vshrl.u32 %v174, 7
  %v176 = vsub.s32 2, %v175
  %v177 = vrot.slane %v16, %v176
  %v178 = vlaneseq
  %v179 = vshrl.u32 %v178, 7
  %v180 = vsub.s32 6, %v179
  %v181 = vrot.slane %v16, %v180
  %v182 = vlaneseq
  %v183 = vshrl.u32 %v182, 7
  %v184 = vsub.s32 2, %v183
  %v185 = vrot.slane %v17, %v184
  %v186 = vlaneseq
  %v187 = vshrl.u32 %v186, 7
  %v188 = vsub.s32 2, %v187
  %v189 = vrot.slane %v18, %v188
  %v190 = vlaneseq
  %v191 = vshrl.u32 %v190, 7
  %v192 = vsub.s32 6, %v191
  %v193 = vrot.slane %v18, %v192
  %v194 = vlaneseq
  %v195 = vshrl.u32 %v194, 7
  %v196 = vsub.s32 2, %v195
  %v197 = vrot.slane %v19, %v196
  %v204 = vlaneseq
  %v205 = vshrl.u32 %v204, 7
  %v206 = vsub.s32 2, %v205
  %v207 = vrot.slane %v177, %v206
  %v208 = vlaneseq
  %v209 = vshrl.u32 %v208, 7
  %v210 = vsub.s32 2, %v209
  %v211 = vrot.slane %v181, %v210
  %v212 = vlaneseq
  %v213 = vshrl.u32 %v212, 7
  %v214 = vsub.s32 2, %v213
  %v215 = vrot.slane %v185, %v214
  %v216 = vlaneseq
  %v217 = vshrl.u32 %v216, 7
  %v218 = vsub.s32 2, %v217
  %v219 = vrot.slane %v189, %v218
  %v220 = vlaneseq
  %v221 = vshrl.u32 %v220, 7
  %v222 = vsub.s32 2, %v221
  %v223 = vrot.slane %v193, %v222
  %v224 = vlaneseq
  %v225 = vshrl.u32 %v224, 7
  %v226 = vsub.s32 2, %v225
  %v227 = vrot.slane %v197, %v226
  %v228 = vmul.f32 %v172, %v207
  %v229 = vmul.f32 %v172, %v211
  %v230 = vmul.f32 %v172, %v215
  %v231 = vmul.f32 %v172, %v219
  %v232 = vmul.f32 %v172, %v223
  %v233 = vmul.f32 %v172, %v227
  %v234 = vadd.f32 %v164, %v228
  %v235 = vadd.f32 %v165, %v229
  %v236 = vadd.f32 %v166, %v230
  %v237 = vadd.f32 %v167, %v231
  %v238 = vadd.f32 %v168, %v232
  %v239 = vadd.f32 %v169, %v233
  %240 = vset.pattern.permute.xlu0 3
  %241 = vperm.xlu0 %240, %v14
  %v242 = vpop.permute.xlu0 %241
  %v244 = vlaneseq
  %v245 = vshrl.u32 %v244, 7
  %v246 = vsub.s32 3, %v245
  %v247 = vrot.slane %v16, %v246
  %v248 = vlaneseq
  %v249 = vshrl.u32 %v248, 7
  %v250 = vsub.s32 7, %v249
  %v251 = vrot.slane %v16, %v250
  %v252 = vlaneseq
  %v253 = vshrl.u32 %v252, 7
  %v254 = vsub.s32 3, %v253
  %v255 = vrot.slane %v17, %v254
  %v256 = vlaneseq
  %v257 = vshrl.u32 %v256, 7
  %v258 = vsub.s32 3, %v257
  %v259 = vrot.slane %v18, %v258
  %v260 = vlaneseq
  %v261 = vshrl.u32 %v260, 7
  %v262 = vsub.s32 7, %v261
  %v263 = vrot.slane %v18, %v262
  %v264 = vlaneseq
  %v265 = vshrl.u32 %v264, 7
  %v266 = vsub.s32 3, %v265
  %v267 = vrot.slane %v19, %v266
  %v274 = vlaneseq
  %v275 = vshrl.u32 %v274, 7
  %v276 = vsub.s32 3, %v275
  %v277 = vrot.slane %v247, %v276
  %v278 = vlaneseq
  %v279 = vshrl.u32 %v278, 7
  %v280 = vsub.s32 3, %v279
  %v281 = vrot.slane %v251, %v280
  %v282 = vlaneseq
  %v283 = vshrl.u32 %v282, 7
  %v284 = vsub.s32 3, %v283
  %v285 = vrot.slane %v255, %v284
  %v286 = vlaneseq
  %v287 = vshrl.u32 %v286, 7
  %v288 = vsub.s32 3, %v287
  %v289 = vrot.slane %v259, %v288
  %v290 = vlaneseq
  %v291 = vshrl.u32 %v290, 7
  %v292 = vsub.s32 3, %v291
  %v293 = vrot.slane %v263, %v292
  %v294 = vlaneseq
  %v295 = vshrl.u32 %v294, 7
  %v296 = vsub.s32 3, %v295
  %v297 = vrot.slane %v267, %v296
  %v298 = vmul.f32 %v242, %v277
  %v299 = vmul.f32 %v242, %v281
  %v300 = vmul.f32 %v242, %v285
  %v301 = vmul.f32 %v242, %v289
  %v302 = vmul.f32 %v242, %v293
  %v303 = vmul.f32 %v242, %v297
  %v304 = vadd.f32 %v234, %v298
  %v305 = vadd.f32 %v235, %v299
  %v306 = vadd.f32 %v236, %v300
  %v307 = vadd.f32 %v237, %v301
  %v308 = vadd.f32 %v238, %v302
  %v309 = vadd.f32 %v239, %v303
  %v310 = vmax.f32 %v304, 0.0
  %v311 = vmax.f32 %v305, 0.0
  %v312 = vmax.f32 %v306, 0.0
  %v313 = vmax.f32 %v307, 0.0
  %v314 = vmax.f32 %v308, 0.0
  %v315 = vmax.f32 %v309, 0.0
  %316 = vst [vmem:[%s3] sm:$0xff] %v310
  %317 = vst [vmem:[%s3 + $0x8] sm:$0xff] %v311
  %vm318 = vcmask 556032
  %319 = vst.msk [vmem:[%s3 + $0x10] sm:$0xff] %vm318, %v312
  %320 = vst [vmem:[%s3 + $0x18] sm:$0xff] %v313
  %321 = vst [vmem:[%s3 + $0x20] sm:$0xff] %v314
  %322 = vst.msk [vmem:[%s3 + $0x28] sm:$0xff] %vm318, %v315
  // Predicated region
  $region14: #{one_by_one_block.1} parent=0 // pred_check
    _
  $region15: #{one_by_one_block.1} parent=0 // pred_check_branch
    %324 = sbr.rel (0) target = $region17
  $region16: #{one_by_one_block.1} parent=0 // pred_region
    _
  $region17: #{one_by_one_block.1} parent=0 // pred_fallthru
    _
  // Predicated region
  $region18: #{one_by_one_block.1} parent=0 // pred_check
    _
  $region19: #{one_by_one_block.1} parent=0 // pred_check_branch
    %326 = sbr.rel (0) target = $region21
  $region20: #{one_by_one_block.1} parent=0 // pred_region
    _
  $region21: #{one_by_one_block.1} parent=0 // pred_fallthru
    _

</llo_original>
